<compile_context>
chip_gen: v7x
topology: tpu7x:2x2x1
jax: 0.10.0
libtpu: 0.0.40
codegen_flags: <defaults>
</compile_context>

<pallas_src>
import functools

import jax
import jax.numpy as jnp
from jax.experimental import pallas as pl
from jax.experimental.pallas import tpu as pltpu


def _round_up(x, m):
    return ((x + m - 1) // m) * m


# Weight stack fully resident in VMEM; dynamic first-axis index selects the
# per-type slice (block_type_ref lives in SMEM via scalar prefetch).
def _grouped_linear_resident_kernel(block_type_ref, x_ref, w_ref, o_ref):
    tid = block_type_ref[pl.program_id(0)]
    o_ref[...] = jnp.dot(
        x_ref[...], w_ref[tid], preferred_element_type=jnp.float32
    ).astype(o_ref.dtype)


# Fallback for large weight stacks: the index_map already picked the slice.
def _grouped_linear_blocked_kernel(block_type_ref, x_ref, w_ref, o_ref):
    o_ref[...] = jnp.dot(
        x_ref[...], w_ref[0], preferred_element_type=jnp.float32
    ).astype(o_ref.dtype)


# Keep the whole weight stack resident when it comfortably fits VMEM
# (well under v7x's 64 MiB physical once x/out double buffers are added).
_RESIDENT_W_BYTES = 8 << 20


def grouped_linear(x_cat, w_stack, block_type_ids, row_tile, out_dtype=jnp.float32):
    """x_cat: (R, D_pad) bf16, w_stack: (T, D_pad, D_out_pad) bf16,
    block_type_ids: (R // row_tile,) int32  ->  (R, D_out_pad) out_dtype."""
    r, d_pad = x_cat.shape
    t, _, d_out_pad = w_stack.shape
    n_blocks = r // row_tile

    x_itemsize = jnp.dtype(x_cat.dtype).itemsize
    w_itemsize = jnp.dtype(w_stack.dtype).itemsize
    o_itemsize = jnp.dtype(out_dtype).itemsize

    w_bytes = t * d_pad * d_out_pad * w_itemsize
    resident = w_bytes <= _RESIDENT_W_BYTES

    if resident:
        kernel = _grouped_linear_resident_kernel
        # Whole stack copied to VMEM once; no per-step weight DMA.
        w_spec = pl.BlockSpec(memory_space=pltpu.MemorySpace.VMEM)
        w_need = w_bytes
    else:
        kernel = _grouped_linear_blocked_kernel
        # Per-type weight slice chosen via the prefetched type id.  When
        # consecutive row blocks share a type the block index is unchanged and
        # Pallas skips the re-DMA (weight stays resident in VMEM).
        w_spec = pl.BlockSpec((1, d_pad, d_out_pad), lambda i, tids: (tids[i], 0, 0))
        w_need = 2 * d_pad * d_out_pad * w_itemsize  # double-buffered slice

    grid_spec = pltpu.PrefetchScalarGridSpec(
        num_scalar_prefetch=1,
        grid=(n_blocks,),
        in_specs=[
            # Row tile of the concatenated activations (lane-dense, bf16).
            pl.BlockSpec((row_tile, d_pad), lambda i, tids: (i, 0)),
            w_spec,
        ],
        out_specs=pl.BlockSpec((row_tile, d_out_pad), lambda i, tids: (i, 0)),
    )

    # Explicit VMEM budget (double-buffered x/out blocks + weights), with
    # headroom, capped at v7x's 64 MiB physical VMEM.
    needed = (
        2 * row_tile * d_pad * x_itemsize
        + 2 * row_tile * d_out_pad * o_itemsize
        + w_need
    )
    vmem_limit = int(min(64 << 20, max(8 << 20, 4 * needed)))

    cost = pl.CostEstimate(
        flops=2 * r * d_pad * d_out_pad,
        transcendentals=0,
        bytes_accessed=(
            r * d_pad * x_itemsize
            + t * d_pad * d_out_pad * w_itemsize
            + r * d_out_pad * o_itemsize
        ),
    )

    return pl.pallas_call(
        kernel,
        out_shape=jax.ShapeDtypeStruct((r, d_out_pad), out_dtype),
        grid_spec=grid_spec,
        compiler_params=pltpu.CompilerParams(
            dimension_semantics=("parallel",),
            vmem_limit_bytes=vmem_limit,
        ),
        cost_estimate=cost,
    )(block_type_ids, x_cat, w_stack)


class UnifySizePallas:
    """Pallas port of UnifySize: a dict of bias-free Linear layers, fused into
    one grouped matmul kernel over all node types."""

    def __init__(self, input_dim, output_dim, key, row_tile=128,
                 out_dtype=jnp.float32):
        # row_tile >= 128 so each grid step does real work (per-step overhead is
        # ~0.35 us); use 256-512 for large graphs with few types.  Must be a
        # multiple of 16 for bf16 sublane packing.
        assert row_tile % 16 == 0 and row_tile >= 16
        self.types = sorted(input_dim)
        self.type_index = {k: i for i, k in enumerate(self.types)}
        self.input_dim = dict(input_dim)
        self.output_dim = output_dim
        self.row_tile = row_tile
        self.out_dtype = out_dtype
        # Lane-dense padded dims (multiples of 128).
        self.d_pad = _round_up(max(input_dim.values()), 128)
        self.d_out_pad = _round_up(output_dim, 128)
        self._plan_cache = {}

        self.weights = {}
        padded = []
        for i, k in enumerate(self.types):
            size = input_dim[k]
            wkey = jax.random.fold_in(key, i)
            # Match nn.Linear default init: U(-1/sqrt(in), 1/sqrt(in)).
            bound = 1.0 / (size ** 0.5)
            # Stored as (D_in, D_out) == W.T so the kernel does x @ w directly.
            w = jax.random.uniform(
                wkey, (size, output_dim), jnp.float32, minval=-bound, maxval=bound
            )
            self.weights[k] = w
            wp = jnp.zeros((self.d_pad, self.d_out_pad), jnp.bfloat16)
            wp = wp.at[:size, :output_dim].set(w.astype(jnp.bfloat16))
            padded.append(wp)
        self.w_stack = jnp.stack(padded)  # (T, D_pad, D_out_pad) bf16

    def _make_run(self, sig):
        """Build (once per feature-shape signature) the packing plan and a
        jitted pack -> kernel -> slice function."""
        tm = self.row_tile
        d_pad, d_out_pad, out_dim = self.d_pad, self.d_out_pad, self.output_dim
        out_dtype = self.out_dtype

        segs = []
        tids = []
        offset = 0
        for k, shape in sig:
            n, d = shape
            n_pad = _round_up(max(n, 1), tm)
            segs.append((k, offset, n, d, n_pad))
            tids.extend([self.type_index[k]] * (n_pad // tm))
            offset += n_pad
        block_type_ids = jnp.asarray(tids, dtype=jnp.int32)

        def run(w_stack, feats):
            xs = [
                jnp.pad(
                    feats[k].astype(jnp.bfloat16),
                    ((0, n_pad - n), (0, d_pad - d)),
                )
                for (k, _off, n, d, n_pad) in segs
            ]
            x_cat = jnp.concatenate(xs, axis=0)  # (R, D_pad) bf16
            out_full = grouped_linear(
                x_cat, w_stack, block_type_ids, tm, out_dtype
            )
            return {
                k: out_full[off:off + n, :out_dim]
                for (k, off, n, _d, _np) in segs
            }

        return jax.jit(run)

    def __call__(self, feats):
        sig = tuple((k, tuple(v.shape)) for k, v in feats.items())
        run = self._plan_cache.get(sig)
        if run is None:
            run = self._make_run(sig)
            self._plan_cache[sig] = run
        return run(self.w_stack, feats)


if __name__ == "__main__":
    key = jax.random.PRNGKey(0)

    # Node types with different feature sizes, unified to output_dim.
    input_dim = {"atom": 16, "bond": 24, "global": 8}
    output_dim = 32
    num_nodes = {"atom": 10, "bond": 12, "global": 2}

    model = UnifySizePallas(input_dim, output_dim, key)

    feats = {}
    for i, (k, d) in enumerate(sorted(input_dim.items())):
        fkey = jax.random.fold_in(key, 100 + i)
        feats[k] = jax.random.normal(fkey, (num_nodes[k], d), jnp.float32)

    out = model(feats)
    out = jax.tree_util.tree_map(jax.block_until_ready, out)

    # Correctness check against plain-JAX f32 reference (x @ W.T).  Inputs and
    # weights go through bf16 in the kernel (f32 accumulation), so use a loose
    # tolerance.
    for k in feats:
        ref = feats[k] @ model.weights[k]
        assert out[k].shape == (num_nodes[k], output_dim), k
        assert out[k].dtype == jnp.float32, k
        assert jnp.allclose(out[k], ref, atol=5e-2, rtol=5e-2), k

    print("KERNEL_OK")
</pallas_src>

<mosaic_0001>
module attributes {stable_mosaic.version = 11 : i64} {
  func.func @_grouped_linear_resident_kernel(%arg0: i32, %arg1: memref<3xi32, #tpu.memory_space<smem>>, %arg2: memref<128x128xbf16, #tpu.memory_space<vmem>>, %arg3: memref<3x128x128xbf16, #tpu.memory_space<vmem>>, %arg4: memref<128x128xf32, #tpu.memory_space<vmem>>) attributes {dimension_semantics = [#tpu.dimension_semantics<parallel>], iteration_bounds = array<i64: 3>, scalar_prefetch = 1 : i64, scratch_operands = 0 : i64, tpu.core_type = #tpu.core_type<tc>, window_params = [{transform_indices = @transform_0, window_bounds = array<i64: 128, 128>}, {pipeline_mode = #tpu.pipeline_mode<synchronous>, transform_indices = @transform_1, window_bounds = array<i64: 3, 128, 128>}, {transform_indices = @transform_2, window_bounds = array<i64: 128, 128>}]} {
    %0 = arith.index_cast %arg0 : i32 to index
    %1 = memref.load %arg1[%0] : memref<3xi32, #tpu.memory_space<smem>>
    %c0 = arith.constant 0 : index
    %c0_0 = arith.constant 0 : index
    %2 = vector.load %arg2[%c0, %c0_0] : memref<128x128xbf16, #tpu.memory_space<vmem>>, vector<128x128xbf16>
    %3 = arith.index_cast %1 : i32 to index
    %c0_1 = arith.constant 0 : index
    %c0_2 = arith.constant 0 : index
    %4 = vector.load %arg3[%3, %c0_1, %c0_2] : memref<3x128x128xbf16, #tpu.memory_space<vmem>>, vector<1x128x128xbf16>
    %5 = vector.shape_cast %4 : vector<1x128x128xbf16> to vector<128x128xbf16>
    %cst = arith.constant dense<0.000000e+00> : vector<128x128xf32>
    %6 = tpu.matmul %2, %5, %cst {dimension_numbers = #tpu.dot_dimension_numbers<[1], [0], [0], [1], [0, 0, 1, 1], [], []>} : vector<128x128xbf16>, vector<128x128xbf16>, vector<128x128xf32> -> vector<128x128xf32>
    %c0_3 = arith.constant 0 : index
    %c0_4 = arith.constant 0 : index
    %7 = vector.load %arg4[%c0_3, %c0_4] : memref<128x128xf32, #tpu.memory_space<vmem>>, vector<128x128xf32>
    tpu.vector_store %arg4[%c0_3, %c0_4], %6 {strides = array<i32>} : memref<128x128xf32, #tpu.memory_space<vmem>>, vector<128x128xf32>,
    return
  }
  func.func @transform_0(%arg0: i32, %arg1: memref<3xi32, #tpu.memory_space<smem>>) -> (i32, i32) {
    %c0_i32 = arith.constant 0 : i32
    %c0_i32_0 = arith.constant 0 : i32
    return %arg0, %c0_i32 : i32, i32
  }
  func.func @transform_1(%arg0: i32, %arg1: memref<3xi32, #tpu.memory_space<smem>>) -> (i32, i32, i32) {
    %c0_i32 = arith.constant 0 : i32
    %c0_i32_0 = arith.constant 0 : i32
    %c0_i32_1 = arith.constant 0 : i32
    %c0_i32_2 = arith.constant 0 : i32
    return %c0_i32, %c0_i32_0, %c0_i32_1 : i32, i32, i32
  }
  func.func @transform_2(%arg0: i32, %arg1: memref<3xi32, #tpu.memory_space<smem>>) -> (i32, i32) {
    %c0_i32 = arith.constant 0 : i32
    %c0_i32_0 = arith.constant 0 : i32
    return %arg0, %c0_i32 : i32, i32
  }
}

</mosaic_0001>

<llo_original>
// kernel: run.1
$region0: #{run.1}
  #allocation0 [shape = 'u32[]', space=smem, size = 0x4, offset = 0x4, fixed_abs, tag = 'smem constant byte address 0x4 - core index']
  #allocation1 [shape = 'u32[144,128]{1,0:T(1,128)}', space=vmem, size = 0x12000, scoped, tag = 'internal scratch']
  #allocation2 [shape = 's32[1]{0}', space=sflag, size = 0x4, scoped, tag = 'scoped memory for run.1']
  #allocation3 [shape = 'u8[512]{0}', space=smem, size = 0x200, scoped, tag = 'prefetched SMEM operand 0']
  %s0 = inlined_call_operand.vmem [shape: s32[3], index: 0, kind: input, shape index: {}]
  %s1 = inlined_call_operand.vmem [shape: bf16[384,128], index: 1, kind: input, shape index: {}]
  %s2 = inlined_call_operand.vmem [shape: bf16[3,128,128], index: 2, kind: input, shape index: {}]
  %s3 = inlined_call_operand.vmem [shape: f32[384,128], index: 3, kind: output, shape index: {}]
  %s4 = sld [smem:[#allocation0]]
  $region41: #{run.1} parent=0
    _
  %s6 = ssub.s32 1, %s4
  %s7 = scalar_select 0, %s6, %s4
  %s8 = sshll.u32 %s0, 4
  %s9 = int_to_ptr.vmem [resolvable:$true] %s8
  %11 = dma.vmem_to_smem %s9, 16, [#allocation3], [#allocation2]
  %12 = dma.done [#allocation2], 16
  %13 = sfence
  loop: start=0, step=1, limit=5
  $region2: #{run.1} parent=0 // loop_pre_header
    _
  $region3: #{run.1} parent=0 // loop_header
    %s15 = sphi 0, %s19
    %p16 = scmp.ge.s32.totalorder %s15, 5
    %s25 = sphi 0, %s27
    %s28 = sphi 0, %s25
    %s29 = sphi 0, %s28
    %s45 = sphi 0, %s29
    %s49 = sphi 0, %s49
    %s51 = sphi 0, %s49
    %s52 = sphi 0, %s51
    %s66 = sphi 0, %s52
    %s72 = sphi 0, %s74
    %s75 = sphi 0, %s72
    %s76 = sphi 0, %s75
    %s92 = sphi 0, %s76
  $region4: #{run.1} parent=0 // loop_header_branch
    %18 = sbr.rel (%p16) target = $region8
  $region5: #{run.1} parent=0 // loop_body
    %s20 = ssub.s32 %s15, 1
    %s21 = ssub.s32 %s15, 2
    %s22 = sadd.s32 %s15, 1
    %s23 = ssub.s32 %s15, %s22
    %p24 = scmp.eq.s32.totalorder %s23, 0
    %s26 = sadd.s32 %s25, 1
    %s27 = scalar_select %p24, %s25, %s26
    %p30 = pneg %p24
    %p31 = scmp.eq.s32.totalorder %s15, 2
    %p32 = por %p30, %p31
    %p33 = scmp.ne.s32.totalorder %s25, %s28
    %p34 = scmp.eq.s32.totalorder %s15, 0
    %p35 = por %p33, %p34
    %p36 = scmp.ne.s32.totalorder %s25, %s28
    %p37 = scmp.eq.s32.totalorder %s20, 2
    %p38 = por %p36, %p37
    %p39 = scmp.ne.s32.totalorder %s28, %s29
    %p40 = scmp.eq.s32.totalorder %s20, 0
    %p41 = por %p39, %p40
    %p42 = scmp.ne.s32.totalorder %s28, %s29
    %p43 = scmp.eq.s32.totalorder %s21, 2
    %p44 = por %p42, %p43
    %p46 = scmp.ne.s32.totalorder %s29, %s45
    %p47 = scmp.eq.s32.totalorder %s21, 0
    %p48 = por %p46, %p47
    %s50 = sadd.s32 %s49, 1
    %p53 = scmp.eq.s32.totalorder %s15, 2
    %p54 = scmp.ne.s32.totalorder %s49, %s51
    %p55 = scmp.eq.s32.totalorder %s15, 0
    %p56 = por %p54, %p55
    %p57 = scmp.ne.s32.totalorder %s49, %s51
    %p58 = scmp.eq.s32.totalorder %s20, 2
    %p59 = por %p57, %p58
    %p60 = scmp.ne.s32.totalorder %s51, %s52
    %p61 = scmp.eq.s32.totalorder %s20, 0
    %p62 = por %p60, %p61
    %p63 = scmp.ne.s32.totalorder %s51, %s52
    %p64 = scmp.eq.s32.totalorder %s21, 2
    %p65 = por %p63, %p64
    %p67 = scmp.ne.s32.totalorder %s52, %s66
    %p68 = scmp.eq.s32.totalorder %s21, 0
    %p69 = por %p67, %p68
    %s70 = ssub.s32 %s15, %s22
    %p71 = scmp.eq.s32.totalorder %s70, 0
    %s73 = sadd.s32 %s72, 1
    %s74 = scalar_select %p71, %s72, %s73
    %p77 = pneg %p71
    %p78 = scmp.eq.s32.totalorder %s15, 2
    %p79 = por %p77, %p78
    %p80 = scmp.ne.s32.totalorder %s72, %s75
    %p81 = scmp.eq.s32.totalorder %s15, 0
    %p82 = por %p80, %p81
    %p83 = scmp.ne.s32.totalorder %s72, %s75
    %p84 = scmp.eq.s32.totalorder %s20, 2
    %p85 = por %p83, %p84
    %p86 = scmp.ne.s32.totalorder %s75, %s76
    %p87 = scmp.eq.s32.totalorder %s20, 0
    %p88 = por %p86, %p87
    %p89 = scmp.ne.s32.totalorder %s75, %s76
    %p90 = scmp.eq.s32.totalorder %s21, 2
    %p91 = por %p89, %p90
    %p93 = scmp.ne.s32.totalorder %s76, %s92
    %p94 = scmp.eq.s32.totalorder %s21, 0
    %p95 = por %p93, %p94
    %p96 = scmp.le.s32.totalorder 1, %s15
    %p97 = scmp.lt.s32.totalorder %s15, 4
    %p98 = pnand %p96, %p97
    %p99 = pneg %p98
    // Predicated region
    $region9: #{run.1} parent=5 // pred_check
      _
    $region10: #{run.1} parent=5 // pred_check_branch
      %101 = sbr.rel (%p98) target = $region12
    $region11: #{run.1} parent=5 // pred_region
      %s102 = ssub.s32 %s15, 1
      // Predicated region
      $region13: #{run.1} parent=11 // pred_check
        %p103 = pneg %p62
      $region14: #{run.1} parent=11 // pred_check_branch
        %105 = sbr.rel (%p103) target = $region16
      $region15: #{run.1} parent=11 // pred_region
        _
      $region16: #{run.1} parent=11 // pred_fallthru
        _
    $region12: #{run.1} parent=5 // pred_fallthru
      _
    %p106 = scmp.lt.s32.totalorder %s15, 3
    // Predicated region
    $region17: #{run.1} parent=5 // pred_check
      %p107 = pneg %p106
    $region18: #{run.1} parent=5 // pred_check_branch
      %109 = sbr.rel (%p107) target = $region20
    $region19: #{run.1} parent=5 // pred_region
      // Predicated region
      $region21: #{run.1} parent=19 // pred_check
        %p110 = pneg %p35
      $region22: #{run.1} parent=19 // pred_check_branch
        %112 = sbr.rel (%p110) target = $region24
      $region23: #{run.1} parent=19 // pred_region
        %s113 = smul.u32 16, %s15
        %p114 = scmp.lt.s32.totalorder %s113, 47
        %s115 = scalar_select %p114, %s113, 47
        %s116 = smul.addr %s115, 4
        %s117 = scalar_lea.vmem %s1, %s116
        %s118 = smul.u32 16, %s15
      $region24: #{run.1} parent=19 // pred_fallthru
        _
    $region20: #{run.1} parent=5 // pred_fallthru
      _
    %p119 = scmp.le.s32.totalorder 1, %s15
    %p120 = scmp.lt.s32.totalorder %s15, 4
    %p121 = pnand %p119, %p120
    %p122 = pneg %p121
    // Predicated region
    $region25: #{run.1} parent=5 // pred_check
      _
    $region26: #{run.1} parent=5 // pred_check_branch
      %124 = sbr.rel (%p121) target = $region28
    $region27: #{run.1} parent=5 // pred_region
      %s125 = ssub.s32 %s15, 1
      %s126 = smul.u32 16, %s20
      %p127 = scmp.lt.s32.totalorder %s126, 47
      %s128 = scalar_select %p127, %s126, 47
      %s129 = smul.addr %s128, 4
      %s130 = scalar_lea.vmem %s1, %s129
      %p131 = pneg %p41
      %p132 = pneg %p38
      %p133 = pneg %p62
      %p134 = pneg %p59
      %p135 = pneg %p88
      %p136 = pneg %p85
      %s137 = smul.u32 16, %s20
      %p138 = scmp.lt.s32.totalorder %s137, 47
      %s139 = scalar_select %p138, %s137, 47
      %s140 = smul.addr %s139, 8
      %s141 = scalar_lea.vmem %s3, %s140
      %s142 = smul.u32 16, %s20
      %p143 = scmp.lt.s32.totalorder %s142, 47
      %s144 = scalar_select %p143, %s142, 47
      %s145 = smul.addr %s144, 4
      %s146 = scalar_lea.vmem %s1, %s145
      %s147 = smul.u32 16, %s20
      %s148 = smul.u32 16, %s20
      %p149 = scmp.lt.s32.totalorder %s148, 47
      %s150 = scalar_select %p149, %s148, 47
      %s151 = smul.addr %s150, 8
      %s152 = scalar_lea.vmem %s3, %s151
      %s153 = smul.u32 16, %s20
      %s155 = sld [smem:[#allocation3 + %s20]]
      %v156 = vld [vmem:[%s146] sm:$0xf]
      %v157 = vld [vmem:[%s146 + $0x4] sm:$0xf]
      %v158 = vld [vmem:[%s146 + $0x8] sm:$0xf]
      %v159 = vld [vmem:[%s146 + $0xc] sm:$0xf]
      %v160 = vld [vmem:[%s146 + $0x10] sm:$0xf]
      %v161 = vld [vmem:[%s146 + $0x14] sm:$0xf]
      %v162 = vld [vmem:[%s146 + $0x18] sm:$0xf]
      %v163 = vld [vmem:[%s146 + $0x1c] sm:$0xf]
      %v164 = vld [vmem:[%s146 + $0x20] sm:$0xf]
      %v165 = vld [vmem:[%s146 + $0x24] sm:$0xf]
      %v166 = vld [vmem:[%s146 + $0x28] sm:$0xf]
      %v167 = vld [vmem:[%s146 + $0x2c] sm:$0xf]
      %v168 = vld [vmem:[%s146 + $0x30] sm:$0xf]
      %v169 = vld [vmem:[%s146 + $0x34] sm:$0xf]
      %v170 = vld [vmem:[%s146 + $0x38] sm:$0xf]
      %v171 = vld [vmem:[%s146 + $0x3c] sm:$0xf]
      %s172 = smul.u32 %s155, 16
      %s173 = smul.addr %s172, 4
      %s174 = scalar_lea.vmem %s2, %s173
      %v175 = vld [vmem:[%s174] sm:$0xf]
      %v176 = vld [vmem:[%s174 + $0x4] sm:$0xf]
      %v177 = vld [vmem:[%s174 + $0x8] sm:$0xf]
      %v178 = vld [vmem:[%s174 + $0xc] sm:$0xf]
      %v179 = vld [vmem:[%s174 + $0x10] sm:$0xf]
      %v180 = vld [vmem:[%s174 + $0x14] sm:$0xf]
      %v181 = vld [vmem:[%s174 + $0x18] sm:$0xf]
      %v182 = vld [vmem:[%s174 + $0x1c] sm:$0xf]
      %v183 = vld [vmem:[%s174 + $0x20] sm:$0xf]
      %v184 = vld [vmem:[%s174 + $0x24] sm:$0xf]
      %v185 = vld [vmem:[%s174 + $0x28] sm:$0xf]
      %v186 = vld [vmem:[%s174 + $0x2c] sm:$0xf]
      %v187 = vld [vmem:[%s174 + $0x30] sm:$0xf]
      %v188 = vld [vmem:[%s174 + $0x34] sm:$0xf]
      %v189 = vld [vmem:[%s174 + $0x38] sm:$0xf]
      %v190 = vld [vmem:[%s174 + $0x3c] sm:$0xf]
      %v207 = vunpack.c.l.b16 %v156
      %v208 = vunpack.c.l.b16 %v157
      %v209 = vunpack.c.l.b16 %v158
      %v210 = vunpack.c.l.b16 %v159
      %v211 = vunpack.c.l.b16 %v160
      %v212 = vunpack.c.l.b16 %v161
      %v213 = vunpack.c.l.b16 %v162
      %v214 = vunpack.c.l.b16 %v163
      %v215 = vunpack.c.l.b16 %v164
      %v216 = vunpack.c.l.b16 %v165
      %v217 = vunpack.c.l.b16 %v166
      %v218 = vunpack.c.l.b16 %v167
      %v219 = vunpack.c.l.b16 %v168
      %v220 = vunpack.c.l.b16 %v169
      %v221 = vunpack.c.l.b16 %v170
      %v222 = vunpack.c.l.b16 %v171
      %v223 = vpack.c.b16 %v208, %v207
      %v224 = vpack.c.b16 %v210, %v209
      %v225 = vpack.c.b16 %v212, %v211
      %v226 = vpack.c.b16 %v214, %v213
      %v227 = vpack.c.b16 %v216, %v215
      %v228 = vpack.c.b16 %v218, %v217
      %v229 = vpack.c.b16 %v220, %v219
      %v230 = vpack.c.b16 %v222, %v221
      %v255 = vunpack.c.l.b16 %v175
      %v256 = vunpack.c.l.b16 %v176
      %v257 = vunpack.c.l.b16 %v177
      %v258 = vunpack.c.l.b16 %v178
      %v259 = vunpack.c.l.b16 %v179
      %v260 = vunpack.c.l.b16 %v180
      %v261 = vunpack.c.l.b16 %v181
      %v262 = vunpack.c.l.b16 %v182
      %v263 = vunpack.c.l.b16 %v183
      %v264 = vunpack.c.l.b16 %v184
      %v265 = vunpack.c.l.b16 %v185
      %v266 = vunpack.c.l.b16 %v186
      %v267 = vunpack.c.l.b16 %v187
      %v268 = vunpack.c.l.b16 %v188
      %v269 = vunpack.c.l.b16 %v189
      %v270 = vunpack.c.l.b16 %v190
      %v271 = vpack.c.b16 %v256, %v255
      %v272 = vpack.c.b16 %v258, %v257
      %v273 = vpack.c.b16 %v260, %v259
      %v274 = vpack.c.b16 %v262, %v261
      %v275 = vpack.c.b16 %v264, %v263
      %v276 = vpack.c.b16 %v266, %v265
      %v277 = vpack.c.b16 %v268, %v267
      %v278 = vpack.c.b16 %v270, %v269
      %287 = vmatprep.subr.bf16.mxu0 0
      %288 = vmatpush1.bf16.msra.mxu0 %v271
      %289 = vmatprep.subr.bf16.mxu0 0
      %290 = vmatpush1.bf16.msra.mxu0 %v272
      %291 = vmatprep.subr.bf16.mxu0 0
      %292 = vmatpush1.bf16.msra.mxu0 %v273
      %293 = vmatprep.subr.bf16.mxu0 0
      %294 = vmatpush1.bf16.msra.mxu0 %v274
      %295 = vmatprep.subr.bf16.mxu0 0
      %296 = vmatpush1.bf16.msra.mxu0 %v275
      %297 = vmatprep.subr.bf16.mxu0 0
      %298 = vmatpush1.bf16.msra.mxu0 %v276
      %299 = vmatprep.subr.bf16.mxu0 0
      %300 = vmatpush1.bf16.msra.mxu0 %v277
      %301 = vmatprep.subr.bf16.mxu0 0
      %302 = vmatpush1.bf16.msra.mxu0 %v278
      %303 = vmatprep.subr.bf16.mxu0 0
      %304 = vmatpush1.bf16.msra.mxu0 0
      %305 = vmatprep.subr.bf16.mxu0 0
      %306 = vmatpush1.bf16.msra.mxu0 0
      %307 = vmatprep.subr.bf16.mxu0 0
      %308 = vmatpush1.bf16.msra.mxu0 0
      %309 = vmatprep.subr.bf16.mxu0 0
      %310 = vmatpush1.bf16.msra.mxu0 0
      %311 = vmatprep.subr.bf16.mxu0 0
      %312 = vmatpush1.bf16.msra.mxu0 0
      %313 = vmatprep.subr.bf16.mxu0 0
      %314 = vmatpush1.bf16.msra.mxu0 0
      %315 = vmatprep.subr.bf16.mxu0 0
      %316 = vmatpush1.bf16.msra.mxu0 0
      %317 = vmatprep.subr.bf16.mxu0 0
      %318 = vmatpush1.bf16.msra.mxu0 0
      %319 = vmatprep.mubr.bf16.mxu0 0
      %320 = vmatmul.mubr.bf16.gmra.mrb[0].mxu0 %v223
      %v321 = vpop.f32.mrb[0].mxu0
      %v322 = vadd.f32 0.0, %v321
      %v323 = vpop.f32.mrb[0].mxu0
      %v324 = vpop.f32.mrb[0].mxu0
      %v325 = vadd.f32 0.0, %v324
      %v326 = vpop.f32.mrb[0].mxu0
      %327 = vmatprep.mubr.bf16.mxu0 0
      %328 = vmatmul.mubr.bf16.gmra.mrb[0].mxu0 %v224
      %v329 = vpop.f32.mrb[0].mxu0
      %v330 = vadd.f32 0.0, %v329
      %v331 = vpop.f32.mrb[0].mxu0
      %v332 = vpop.f32.mrb[0].mxu0
      %v333 = vadd.f32 0.0, %v332
      %v334 = vpop.f32.mrb[0].mxu0
      %335 = vmatprep.mubr.bf16.mxu0 0
      %336 = vmatmul.mubr.bf16.gmra.mrb[0].mxu0 %v225
      %v337 = vpop.f32.mrb[0].mxu0
      %v338 = vadd.f32 0.0, %v337
      %v339 = vpop.f32.mrb[0].mxu0
      %v340 = vpop.f32.mrb[0].mxu0
      %v341 = vadd.f32 0.0, %v340
      %v342 = vpop.f32.mrb[0].mxu0
      %343 = vmatprep.mubr.bf16.mxu0 0
      %344 = vmatmul.mubr.bf16.gmra.mrb[0].mxu0 %v226
      %v345 = vpop.f32.mrb[0].mxu0
      %v346 = vadd.f32 0.0, %v345
      %v347 = vpop.f32.mrb[0].mxu0
      %v348 = vpop.f32.mrb[0].mxu0
      %v349 = vadd.f32 0.0, %v348
      %v350 = vpop.f32.mrb[0].mxu0
      %351 = vmatprep.mubr.bf16.mxu0 0
      %352 = vmatmul.mubr.bf16.gmra.mrb[0].mxu0 %v227
      %v353 = vpop.f32.mrb[0].mxu0
      %v354 = vadd.f32 0.0, %v353
      %v355 = vpop.f32.mrb[0].mxu0
      %v356 = vpop.f32.mrb[0].mxu0
      %v357 = vadd.f32 0.0, %v356
      %v358 = vpop.f32.mrb[0].mxu0
      %359 = vmatprep.mubr.bf16.mxu0 0
      %360 = vmatmul.mubr.bf16.gmra.mrb[0].mxu0 %v228
      %v361 = vpop.f32.mrb[0].mxu0
      %v362 = vadd.f32 0.0, %v361
      %v363 = vpop.f32.mrb[0].mxu0
      %v364 = vpop.f32.mrb[0].mxu0
      %v365 = vadd.f32 0.0, %v364
      %v366 = vpop.f32.mrb[0].mxu0
      %367 = vmatprep.mubr.bf16.mxu0 0
      %368 = vmatmul.mubr.bf16.gmra.mrb[0].mxu0 %v229
      %v369 = vpop.f32.mrb[0].mxu0
      %v370 = vadd.f32 0.0, %v369
      %v371 = vpop.f32.mrb[0].mxu0
      %v372 = vpop.f32.mrb[0].mxu0
      %v373 = vadd.f32 0.0, %v372
      %v374 = vpop.f32.mrb[0].mxu0
      %375 = vmatprep.mubr.bf16.mxu0 0
      %376 = vmatmul.mubr.bf16.gmra.mrb[0].mxu0 %v230
      %v377 = vpop.f32.mrb[0].mxu0
      %v378 = vadd.f32 0.0, %v377
      %v379 = vpop.f32.mrb[0].mxu0
      %v380 = vpop.f32.mrb[0].mxu0
      %v381 = vadd.f32 0.0, %v380
      %v382 = vpop.f32.mrb[0].mxu0
      %383 = vdwg.mxu0
      %384 = vst [vmem:[%s152] sm:$0xff] %v322
      %385 = vst [vmem:[%s152 + $0x8] sm:$0xff] %v325
      %386 = vst [vmem:[%s152 + $0x10] sm:$0xff] %v330
      %387 = vst [vmem:[%s152 + $0x18] sm:$0xff] %v333
      %388 = vst [vmem:[%s152 + $0x20] sm:$0xff] %v338
      %389 = vst [vmem:[%s152 + $0x28] sm:$0xff] %v341
      %390 = vst [vmem:[%s152 + $0x30] sm:$0xff] %v346
      %391 = vst [vmem:[%s152 + $0x38] sm:$0xff] %v349
      %392 = vst [vmem:[%s152 + $0x40] sm:$0xff] %v354
      %393 = vst [vmem:[%s152 + $0x48] sm:$0xff] %v357
      %394 = vst [vmem:[%s152 + $0x50] sm:$0xff] %v362
      %395 = vst [vmem:[%s152 + $0x58] sm:$0xff] %v365
      %396 = vst [vmem:[%s152 + $0x60] sm:$0xff] %v370
      %397 = vst [vmem:[%s152 + $0x68] sm:$0xff] %v373
      %398 = vst [vmem:[%s152 + $0x70] sm:$0xff] %v378
      %399 = vst [vmem:[%s152 + $0x78] sm:$0xff] %v381
      %s400 = smul.u32 16, %s20
      %p401 = scmp.lt.s32.totalorder %s400, 47
      %s402 = scalar_select %p401, %s400, 47
      %s403 = smul.addr %s402, 8
      %s404 = scalar_lea.vmem %s3, %s403
      // Predicated region
      $region29: #{run.1} parent=27 // pred_check
        %p405 = pneg %p85
      $region30: #{run.1} parent=27 // pred_check_branch
        %407 = sbr.rel (%p405) target = $region32
      $region31: #{run.1} parent=27 // pred_region
        %s408 = smul.u32 16, %s20
      $region32: #{run.1} parent=27 // pred_fallthru
        _
    $region28: #{run.1} parent=5 // pred_fallthru
      _
    %p409 = scmp.le.s32.totalorder 2, %s15
    // Predicated region
    $region33: #{run.1} parent=5 // pred_check
      %p410 = pneg %p409
    $region34: #{run.1} parent=5 // pred_check_branch
      %412 = sbr.rel (%p410) target = $region36
    $region35: #{run.1} parent=5 // pred_region
      %s413 = ssub.s32 %s15, 2
      // Predicated region
      $region37: #{run.1} parent=35 // pred_check
        %p414 = pneg %p91
      $region38: #{run.1} parent=35 // pred_check_branch
        %416 = sbr.rel (%p414) target = $region40
      $region39: #{run.1} parent=35 // pred_region
        %s417 = smul.u32 16, %s21
        %p418 = scmp.lt.s32.totalorder %s417, 47
        %s419 = scalar_select %p418, %s417, 47
        %s420 = smul.addr %s419, 8
        %s421 = scalar_lea.vmem %s3, %s420
      $region40: #{run.1} parent=35 // pred_fallthru
        _
    $region36: #{run.1} parent=5 // pred_fallthru
      _
  $region6: #{run.1} parent=0 // loop_footer
    %s19 = sadd.s32 1, %s15
  $region7: #{run.1} parent=0 // loop_footer_branch
    %14 = sbr.rel target = $region3
  $region8: #{run.1} parent=0 // loop_exit
    _

</llo_original>
